<compile_context>
chip_gen: v5e
topology: v5e:2x2
jax: 0.10.0
libtpu: 0.0.40
codegen_flags: <defaults>
</compile_context>

<pallas_src>
import functools

import jax
import jax.numpy as jnp
from jax import lax
from jax.experimental import pallas as pl
from jax.experimental.pallas import tpu as pltpu


def _round_up(x: int, m: int) -> int:
    return ((x + m - 1) // m) * m


# Features at or below this size take the VMEM-resident one-hot-MXU path.
# Chosen so the path fits comfortably even under v5e's 16 MiB scoped-VMEM
# default and well under v7x's 64 MiB physical VMEM.
_FEAT_VMEM_CUTOFF_BYTES = 12 * 1024 * 1024


def _run_selection(scores, *, k, max_only, n, n_pad, out_pad, emit):
    """Interleaved top-k / bottom-k selection, fully vreg-resident.

    scores:  [1, n_pad] f32 lane-dense slab (padding lanes are masked out).
    emit(row, idx): callback invoked once per selected output row with the
        (traced, clamped) source-row index.
    Returns the [1, out_pad] f32 slab of selected attention scores.
    """
    lane_iota = lax.broadcasted_iota(jnp.int32, (1, n_pad), 1)
    out_iota = lax.broadcasted_iota(jnp.int32, (1, out_pad), 1)
    valid = lane_iota < n

    neg_inf = jnp.float32(-jnp.inf)
    pos_inf = jnp.float32(jnp.inf)

    avail_top = valid              # not-yet-picked mask (top search)
    avail_bot = valid              # not-yet-picked mask (bottom search)
    sel_att_acc = jnp.zeros((1, out_pad), jnp.float32)

    for i in range(k):
        # top pick i -> output row i
        sv = jnp.where(avail_top, scores, neg_inf)
        mval = jnp.max(sv)
        cand = (sv == mval) & avail_top
        idx_t = jnp.min(jnp.where(cand, lane_iota, n_pad))
        idx_t = jnp.minimum(idx_t, n - 1).astype(jnp.int32)   # clamp: never OOB
        avail_top = avail_top & (lane_iota != idx_t)
        sel_att_acc = jnp.where(out_iota == i, mval, sel_att_acc)
        emit(i, idx_t)

        if not max_only:
            # bottom pick i (i-th smallest) -> output row 2k-1-i
            sv = jnp.where(avail_bot, scores, pos_inf)
            mval = jnp.min(sv)
            cand = (sv == mval) & avail_bot
            idx_b = jnp.min(jnp.where(cand, lane_iota, n_pad))
            idx_b = jnp.minimum(idx_b, n - 1).astype(jnp.int32)
            row = 2 * k - 1 - i
            avail_bot = avail_bot & (lane_iota != idx_b)
            sel_att_acc = jnp.where(out_iota == row, mval, sel_att_acc)
            emit(row, idx_b)

    return sel_att_acc


def _minmax_vmem_kernel(att_ref, feat_ref, sel_att_ref, sel_feat_ref,
                        *, k, max_only, n, n_pad, out_rows, out_rows_mm,
                        out_pad):
    """Fast path: features VMEM-resident, row gather via one-hot MXU matmul."""
    row_iota = lax.broadcasted_iota(jnp.int32, (out_rows_mm, n), 0)
    col_iota = lax.broadcasted_iota(jnp.int32, (out_rows_mm, n), 1)
    onehot = [jnp.zeros((out_rows_mm, n), jnp.float32)]   # closure cell

    def emit(row, idx):
        # No scalar extraction needed: idx stays a vector-broadcast compare.
        onehot[0] = jnp.where((row_iota == row) & (col_iota == idx),
                              jnp.float32(1.0), onehot[0])

    scores = att_ref[...]
    sel_att_acc = _run_selection(scores, k=k, max_only=max_only, n=n,
                                 n_pad=n_pad, out_pad=out_pad, emit=emit)
    sel_att_ref[...] = sel_att_acc.astype(sel_att_ref.dtype)

    feat = feat_ref[...]
    gathered = jnp.dot(onehot[0].astype(feat.dtype), feat,
                       preferred_element_type=jnp.float32)
    sel_feat_ref[...] = gathered[:out_rows].astype(sel_feat_ref.dtype)


def _minmax_hbm_kernel(att_ref, feat_hbm, sel_att_ref, sel_feat_ref, dma_sem,
                       *, k, max_only, n, n_pad, out_rows, out_pad):
    """Fallback: features stay in HBM; selected rows are DMA'd as soon as
    each pick's index is known (latency hidden under remaining picks)."""
    copies = []

    def emit(row, idx):
        cp = pltpu.make_async_copy(
            feat_hbm.at[pl.ds(idx, 1), :],
            sel_feat_ref.at[pl.ds(row, 1), :],
            dma_sem.at[row])
        cp.start()                 # overlap with the rest of the pick loop
        copies.append(cp)

    scores = att_ref[...]
    sel_att_acc = _run_selection(scores, k=k, max_only=max_only, n=n,
                                 n_pad=n_pad, out_pad=out_pad, emit=emit)
    sel_att_ref[...] = sel_att_acc.astype(sel_att_ref.dtype)

    for cp in copies:
        cp.wait()


def min_max_layer(x_features, x_attention, *, k_min_max: int = 1,
                  max_only: bool = False,
                  feat_vmem_cutoff_bytes: int = _FEAT_VMEM_CUTOFF_BYTES):
    """Pallas implementation of MinMaxLayer.forward.

    Returns (selected_att, selected_features) with shapes
      ([k,1], [k,D])   if max_only
      ([2k,1], [2k,D]) otherwise
    """
    n, d = x_features.shape
    assert x_attention.shape in ((n, 1), (n,))
    if k_min_max > n:
        raise ValueError("k_min_max must be <= number of instances")

    out_rows = k_min_max if max_only else 2 * k_min_max
    n_pad = max(128, _round_up(n, 128))
    out_pad = max(128, _round_up(out_rows, 128))
    out_rows_mm = max(8, _round_up(out_rows, 8))   # sublane-friendly matmul LHS

    att_dtype = x_attention.dtype
    feat_dtype = x_features.dtype
    feat_bytes = int(n * d * jnp.dtype(feat_dtype).itemsize)

    # lane-dense score slab (pad positions are masked out inside the kernel)
    att_flat = x_attention.reshape(n).astype(jnp.float32)
    att_padded = jnp.zeros((1, n_pad), jnp.float32).at[0, :n].set(att_flat)

    out_shape = (
        jax.ShapeDtypeStruct((1, out_pad), att_dtype),
        jax.ShapeDtypeStruct((out_rows, d), feat_dtype),
    )
    out_bytes = int(out_pad * jnp.dtype(att_dtype).itemsize
                    + out_rows * d * jnp.dtype(feat_dtype).itemsize)

    if feat_bytes <= feat_vmem_cutoff_bytes:
        # ---- fast path: VMEM features + one-hot MXU gather ----
        kernel = functools.partial(
            _minmax_vmem_kernel, k=k_min_max, max_only=max_only, n=n,
            n_pad=n_pad, out_rows=out_rows, out_rows_mm=out_rows_mm,
            out_pad=out_pad)
        sel_att_slab, sel_feat = pl.pallas_call(
            kernel,
            out_shape=out_shape,
            in_specs=[
                pl.BlockSpec(memory_space=pltpu.MemorySpace.VMEM),  # scores
                pl.BlockSpec(memory_space=pltpu.MemorySpace.VMEM),  # features
            ],
            out_specs=(
                pl.BlockSpec(memory_space=pltpu.MemorySpace.VMEM),
                pl.BlockSpec(memory_space=pltpu.MemorySpace.VMEM),
            ),
            compiler_params=pltpu.CompilerParams(
                vmem_limit_bytes=32 * 1024 * 1024),
            cost_estimate=pl.CostEstimate(
                flops=int(2 * out_rows_mm * n * d),
                transcendentals=0,
                bytes_accessed=int(n_pad * 4 + feat_bytes + out_bytes)),
        )(att_padded, x_features)
    else:
        # ---- fallback: HBM-resident features, per-row DMA gather ----
        kernel = functools.partial(
            _minmax_hbm_kernel, k=k_min_max, max_only=max_only, n=n,
            n_pad=n_pad, out_rows=out_rows, out_pad=out_pad)
        sel_att_slab, sel_feat = pl.pallas_call(
            kernel,
            out_shape=out_shape,
            in_specs=[
                pl.BlockSpec(memory_space=pltpu.MemorySpace.VMEM),  # scores
                pl.BlockSpec(memory_space=pl.ANY),                  # features: HBM
            ],
            out_specs=(
                pl.BlockSpec(memory_space=pltpu.MemorySpace.VMEM),
                pl.BlockSpec(memory_space=pltpu.MemorySpace.VMEM),
            ),
            scratch_shapes=[
                pltpu.SemaphoreType.DMA((out_rows,)),   # one sem per row DMA
            ],
            cost_estimate=pl.CostEstimate(
                flops=0,
                transcendentals=0,
                bytes_accessed=int(
                    n_pad * 4
                    + 2 * out_rows * d * jnp.dtype(feat_dtype).itemsize
                    + out_pad * jnp.dtype(att_dtype).itemsize)),
        )(att_padded, x_features)

    sel_att = sel_att_slab[0, :out_rows].reshape(out_rows, 1)
    return sel_att, sel_feat


def _reference(x_features, x_attention, k, max_only):
    att_1d = jnp.squeeze(x_attention)
    order = jnp.argsort(-att_1d)  # descending
    sorted_att = x_attention[order, :]
    sorted_feat = x_features[order, :]
    if max_only:
        return sorted_att[:k, :], sorted_feat[:k, :]
    sel_att = jnp.concatenate([sorted_att[:k, :], sorted_att[-k:, :]], axis=0)
    sel_feat = jnp.concatenate([sorted_feat[:k, :], sorted_feat[-k:, :]], axis=0)
    return sel_att, sel_feat


if __name__ == "__main__":
    key = jax.random.PRNGKey(0)

    # case 1: small bag matching the module defaults (N=8 instances, D=32, k=1)
    kf, ka = jax.random.split(key)
    N, D, K = 8, 32, 1
    x_features = jax.random.normal(kf, (N, D), dtype=jnp.float32)
    x_attention = jax.random.normal(ka, (N, 1), dtype=jnp.float32)

    sel_att, sel_feat = min_max_layer(x_features, x_attention,
                                      k_min_max=K, max_only=False)
    jax.block_until_ready((sel_att, sel_feat))
    ref_att, ref_feat = _reference(x_features, x_attention, K, False)
    assert sel_att.shape == (2 * K, 1) and sel_feat.shape == (2 * K, D)
    assert jnp.allclose(sel_att, ref_att)
    assert jnp.allclose(sel_feat, ref_feat)

    # max_only path
    sel_att_m, sel_feat_m = min_max_layer(x_features, x_attention,
                                          k_min_max=K, max_only=True)
    jax.block_until_ready((sel_att_m, sel_feat_m))
    ref_att_m, ref_feat_m = _reference(x_features, x_attention, K, True)
    assert jnp.allclose(sel_att_m, ref_att_m)
    assert jnp.allclose(sel_feat_m, ref_feat_m)

    # case 2: exercise N > 128 (multi-vreg scores) and k > 1
    kf2, ka2 = jax.random.split(jax.random.PRNGKey(0), 2)
    N2, D2, K2 = 200, 32, 2
    xf2 = jax.random.normal(kf2, (N2, D2), dtype=jnp.float32)
    xa2 = jax.random.normal(ka2, (N2, 1), dtype=jnp.float32)
    sa2, sf2 = min_max_layer(xf2, xa2, k_min_max=K2, max_only=False)
    jax.block_until_ready((sa2, sf2))
    ra2, rf2 = _reference(xf2, xa2, K2, False)
    assert jnp.allclose(sa2, ra2)
    assert jnp.allclose(sf2, rf2)

    print("KERNEL_OK")
</pallas_src>

<mosaic_0001>
module attributes {stable_mosaic.version = 11 : i64} {
  func.func @_minmax_vmem_kernel(%arg0: memref<1x128xf32, #tpu.memory_space<vmem>>, %arg1: memref<8x32xf32, #tpu.memory_space<vmem>>, %arg2: memref<1x128xf32, #tpu.memory_space<vmem>>, %arg3: memref<2x32xf32, #tpu.memory_space<vmem>>) attributes {dimension_semantics = [], scalar_prefetch = 0 : i64, scratch_operands = 0 : i64, tpu.core_type = #tpu.core_type<tc>} {
    %0 = tpu.iota {dimensions = array<i32: 0>} : vector<8x8xi32>
    %1 = tpu.iota {dimensions = array<i32: 1>} : vector<8x8xi32>
    %cst = arith.constant 0.000000e+00 : f32
    %2 = vector.broadcast %cst : f32 to vector<8x8xf32>
    %c0 = arith.constant 0 : index
    %c0_0 = arith.constant 0 : index
    %3 = vector.load %arg0[%c0, %c0_0] : memref<1x128xf32, #tpu.memory_space<vmem>>, vector<1x128xf32>
    %4 = tpu.iota {dimensions = array<i32: 1>} : vector<1x128xi32>
    %5 = tpu.iota {dimensions = array<i32: 1>} : vector<1x128xi32>
    %c8_i32 = arith.constant 8 : i32
    %6 = vector.broadcast %c8_i32 : i32 to vector<1x128xi32>
    %7 = arith.cmpi slt, %4, %6 : vector<1x128xi32>
    %cst_1 = arith.constant 0.000000e+00 : f32
    %8 = vector.broadcast %cst_1 : f32 to vector<1x128xf32>
    %cst_2 = arith.constant 0xFF800000 : f32
    %9 = vector.broadcast %cst_2 : f32 to vector<1x128xf32>
    %10 = arith.select %7, %3, %9 : vector<1x128xi1>, vector<1x128xf32>
    %11 = vector.shape_cast %10 : vector<1x128xf32> to vector<1x1x128xf32>
    %cst_3 = arith.constant dense<0xFF800000> : vector<1xf32>
    %12 = vector.multi_reduction <maximumf>, %11, %cst_3 [1, 2] : vector<1x1x128xf32> to vector<1xf32>
    %13 = vector.shape_cast %12 : vector<1xf32> to vector<1x1x1xf32>
    %14 = vector.extract %13[0, 0, 0] : f32 from vector<1x1x1xf32>
    %15 = vector.broadcast %14 : f32 to vector<1x128xf32>
    %16 = arith.cmpf oeq, %10, %15 : vector<1x128xf32>
    %17 = arith.andi %16, %7 : vector<1x128xi1>
    %c128_i32 = arith.constant 128 : i32
    %18 = vector.broadcast %c128_i32 : i32 to vector<1x128xi32>
    %19 = arith.select %17, %4, %18 : vector<1x128xi1>, vector<1x128xi32>
    %20 = vector.shape_cast %19 : vector<1x128xi32> to vector<1x1x128xi32>
    %cst_4 = arith.constant dense<2147483647> : vector<1xi32>
    %21 = vector.multi_reduction <minsi>, %20, %cst_4 [1, 2] : vector<1x1x128xi32> to vector<1xi32>
    %22 = vector.shape_cast %21 : vector<1xi32> to vector<1x1x1xi32>
    %23 = vector.extract %22[0, 0, 0] : i32 from vector<1x1x1xi32>
    %c7_i32 = arith.constant 7 : i32
    %24 = arith.minsi %23, %c7_i32 : i32
    %c0_i32 = arith.constant 0 : i32
    %25 = vector.broadcast %c0_i32 : i32 to vector<1x128xi32>
    %26 = arith.cmpi eq, %5, %25 : vector<1x128xi32>
    %27 = vector.broadcast %14 : f32 to vector<1x128xf32>
    %28 = arith.select %26, %27, %8 : vector<1x128xi1>, vector<1x128xf32>
    %c0_i32_5 = arith.constant 0 : i32
    %29 = vector.broadcast %c0_i32_5 : i32 to vector<8x8xi32>
    %30 = arith.cmpi eq, %0, %29 : vector<8x8xi32>
    %31 = vector.broadcast %24 : i32 to vector<8x8xi32>
    %32 = arith.cmpi eq, %1, %31 : vector<8x8xi32>
    %33 = arith.andi %30, %32 : vector<8x8xi1>
    %cst_6 = arith.constant 1.000000e+00 : f32
    %34 = vector.broadcast %cst_6 : f32 to vector<8x8xf32>
    %35 = arith.select %33, %34, %2 : vector<8x8xi1>, vector<8x8xf32>
    %cst_7 = arith.constant 0x7F800000 : f32
    %36 = vector.broadcast %cst_7 : f32 to vector<1x128xf32>
    %37 = arith.select %7, %3, %36 : vector<1x128xi1>, vector<1x128xf32>
    %38 = vector.shape_cast %37 : vector<1x128xf32> to vector<1x1x128xf32>
    %cst_8 = arith.constant dense<0x7F800000> : vector<1xf32>
    %39 = vector.multi_reduction <minimumf>, %38, %cst_8 [1, 2] : vector<1x1x128xf32> to vector<1xf32>
    %40 = vector.shape_cast %39 : vector<1xf32> to vector<1x1x1xf32>
    %41 = vector.extract %40[0, 0, 0] : f32 from vector<1x1x1xf32>
    %42 = vector.broadcast %41 : f32 to vector<1x128xf32>
    %43 = arith.cmpf oeq, %37, %42 : vector<1x128xf32>
    %44 = arith.andi %43, %7 : vector<1x128xi1>
    %c128_i32_9 = arith.constant 128 : i32
    %45 = vector.broadcast %c128_i32_9 : i32 to vector<1x128xi32>
    %46 = arith.select %44, %4, %45 : vector<1x128xi1>, vector<1x128xi32>
    %47 = vector.shape_cast %46 : vector<1x128xi32> to vector<1x1x128xi32>
    %cst_10 = arith.constant dense<2147483647> : vector<1xi32>
    %48 = vector.multi_reduction <minsi>, %47, %cst_10 [1, 2] : vector<1x1x128xi32> to vector<1xi32>
    %49 = vector.shape_cast %48 : vector<1xi32> to vector<1x1x1xi32>
    %50 = vector.extract %49[0, 0, 0] : i32 from vector<1x1x1xi32>
    %c7_i32_11 = arith.constant 7 : i32
    %51 = arith.minsi %50, %c7_i32_11 : i32
    %c1_i32 = arith.constant 1 : i32
    %52 = vector.broadcast %c1_i32 : i32 to vector<1x128xi32>
    %53 = arith.cmpi eq, %5, %52 : vector<1x128xi32>
    %54 = vector.broadcast %41 : f32 to vector<1x128xf32>
    %55 = arith.select %53, %54, %28 : vector<1x128xi1>, vector<1x128xf32>
    %c1_i32_12 = arith.constant 1 : i32
    %56 = vector.broadcast %c1_i32_12 : i32 to vector<8x8xi32>
    %57 = arith.cmpi eq, %0, %56 : vector<8x8xi32>
    %58 = vector.broadcast %51 : i32 to vector<8x8xi32>
    %59 = arith.cmpi eq, %1, %58 : vector<8x8xi32>
    %60 = arith.andi %57, %59 : vector<8x8xi1>
    %cst_13 = arith.constant 1.000000e+00 : f32
    %61 = vector.broadcast %cst_13 : f32 to vector<8x8xf32>
    %62 = arith.select %60, %61, %35 : vector<8x8xi1>, vector<8x8xf32>
    %c0_14 = arith.constant 0 : index
    %c0_15 = arith.constant 0 : index
    %63 = vector.load %arg2[%c0_14, %c0_15] : memref<1x128xf32, #tpu.memory_space<vmem>>, vector<1x128xf32>
    tpu.vector_store %arg2[%c0_14, %c0_15], %55 {strides = array<i32>} : memref<1x128xf32, #tpu.memory_space<vmem>>, vector<1x128xf32>,
    %c0_16 = arith.constant 0 : index
    %c0_17 = arith.constant 0 : index
    %64 = vector.load %arg1[%c0_16, %c0_17] : memref<8x32xf32, #tpu.memory_space<vmem>>, vector<8x32xf32>
    %cst_18 = arith.constant dense<0.000000e+00> : vector<8x32xf32>
    %65 = tpu.matmul %62, %64, %cst_18 {dimension_numbers = #tpu.dot_dimension_numbers<[1], [0], [0], [1], [0, 0, 1, 1], [], []>} : vector<8x8xf32>, vector<8x32xf32>, vector<8x32xf32> -> vector<8x32xf32>
    %66 = vector.extract_strided_slice %65 {offsets = [0, 0], sizes = [2, 32], strides = [1, 1]} : vector<8x32xf32> to vector<2x32xf32>
    %c0_19 = arith.constant 0 : index
    %c0_20 = arith.constant 0 : index
    %67 = vector.load %arg3[%c0_19, %c0_20] : memref<2x32xf32, #tpu.memory_space<vmem>>, vector<2x32xf32>
    tpu.vector_store %arg3[%c0_19, %c0_20], %66 {strides = array<i32>} : memref<2x32xf32, #tpu.memory_space<vmem>>, vector<2x32xf32>,
    return
  }
}

</mosaic_0001>

<llo_original>
// kernel: tpu_custom_call.1
$region0: #{tpu_custom_call.1}
  #allocation0 [shape = 'u32[]', space=smem, size = 0x4, offset = 0x4, fixed_abs, tag = 'smem constant byte address 0x4 - core index']
  #allocation1 [shape = 'u32[72,128]{1,0:T(1,128)}', space=vmem, size = 0x9000, scoped, tag = 'internal scratch']
  %s0 = inlined_call_operand.hbm [shape: f32[1,128], index: 0, kind: input, shape index: {}]
  %s1 = inlined_call_operand.hbm [shape: f32[8,32], index: 1, kind: input, shape index: {}]
  %s2 = inlined_call_operand.hbm [shape: f32[1,128], index: 2, kind: output, shape index: {0}]
  %s3 = inlined_call_operand.hbm [shape: f32[2,32], index: 3, kind: output, shape index: {1}]
  %4 = xla_tuple %s2, %s3
  %s5 = sld [smem:[#allocation0]]
  $region34: #{tpu_custom_call.1} parent=0
    _
  %s7 = ssub.s32 1, %s5
  %s8 = scalar_select 0, %s7, %s5
  $region1: #{tpu_custom_call.1} parent=0
    #allocation2 [shape = 'u8[512]{0}', space=vmem, size = 0x400, scoped, tag = 'input window, operand 0, single buffered']
    #allocation3 [shape = 's32[1]{0}', space=sflag, size = 0x4, scoped, tag = 'scoped memory for tpu_custom_call.1']
    #allocation4 [shape = 's32[1]{0}', space=sflag, size = 0x4, scoped, tag = 'scoped memory for tpu_custom_call.1']
    #allocation5 [shape = 'u8[4096]{0}', space=vmem, size = 0x1000, scoped, tag = 'input window, operand 1, single buffered']
    #allocation6 [shape = 's32[1]{0}', space=sflag, size = 0x4, scoped, tag = 'scoped memory for tpu_custom_call.1']
    #allocation7 [shape = 'u8[512]{0}', space=vmem, size = 0x400, scoped, tag = 'output window, operand 0, single buffered']
    #allocation8 [shape = 'u8[1024]{0}', space=vmem, size = 0x400, scoped, tag = 'output window, operand 1, single buffered']
    #allocation9 [shape = 's32[1]{0}', space=sflag, size = 0x4, scoped, tag = 'scoped memory for tpu_custom_call.1']
    %9 = vsyncpa [#allocation3], 0
    %10 = vsyncpa [#allocation6], 0
    %11 = vsyncpa [#allocation4], 0
    %12 = vsyncpa [#allocation9], 0
    // Predicated region
    $region2: #{tpu_custom_call.1} parent=1 // pred_check
      _
    $region3: #{tpu_custom_call.1} parent=1 // pred_check_branch
      %14 = sbr.rel (0) target = $region5
    $region4: #{tpu_custom_call.1} parent=1 // pred_region
      %16 = vsyncadd [#allocation3], 0
      %s18 = sshll.u32 %s0, 4
      %s19 = int_to_ptr.hbm [resolvable:$true] %s18
      %s20 = sshll.u32 [#allocation2], 4
      %s21 = int_to_ptr.vmem [resolvable:$true] %s20
      %23 = dma.hbm_to_vmem [thread:$0]  %s19, 16, %s21, [#allocation3]
    $region5: #{tpu_custom_call.1} parent=1 // pred_fallthru
      _
    // Predicated region
    $region6: #{tpu_custom_call.1} parent=1 // pred_check
      _
    $region7: #{tpu_custom_call.1} parent=1 // pred_check_branch
      %25 = sbr.rel (0) target = $region9
    $region8: #{tpu_custom_call.1} parent=1 // pred_region
      %27 = vsyncadd [#allocation6], 0
      %s29 = sshll.u32 %s1, 4
      %s30 = int_to_ptr.hbm [resolvable:$true] %s29
      %s31 = sshll.u32 [#allocation5], 4
      %s32 = int_to_ptr.vmem [resolvable:$true] %s31
      %34 = dma.hbm_to_vmem [thread:$0]  %s30, 128, %s32, [#allocation6]
    $region9: #{tpu_custom_call.1} parent=1 // pred_fallthru
      _
    // Predicated region
    $region10: #{tpu_custom_call.1} parent=1 // pred_check
      _
    $region11: #{tpu_custom_call.1} parent=1 // pred_check_branch
      %36 = sbr.rel (0) target = $region13
    $region12: #{tpu_custom_call.1} parent=1 // pred_region
      %38 = dma.done [#allocation3], 16
    $region13: #{tpu_custom_call.1} parent=1 // pred_fallthru
      _
    // Predicated region
    $region14: #{tpu_custom_call.1} parent=1 // pred_check
      _
    $region15: #{tpu_custom_call.1} parent=1 // pred_check_branch
      %40 = sbr.rel (0) target = $region17
    $region16: #{tpu_custom_call.1} parent=1 // pred_region
      %42 = dma.done [#allocation6], 128
    $region17: #{tpu_custom_call.1} parent=1 // pred_fallthru
      _
    %v43 = vlaneseq
    %v44 = vshrl.u32 %v43, 7
    %v45 = vlaneseq
    %v46 = vand.u32 %v45, 127
    %v47 = vld [vmem:[#allocation2] sm:$0x1]
    %vm48 = vcmp.lt.s32.totalorder %v46, 8
    %v49 = vsel %vm48, %v47, -inf
    %vm50 = vcmask 1040384
    %v51 = vsel %vm50, %v49, -inf
    %52 = vmax.xlane.f32.xlu0 %v51
    %v53 = vpop.xlane.xlu0 %52
    %v54 = vrot.slane %v53, 4
    %v55 = vmax.f32 %v53, %v54
    %v56 = vrot.slane %v55, 2
    %v57 = vmax.f32 %v55, %v56
    %v58 = vrot.slane %v57, 1
    %v59 = vmax.f32 %v57, %v58
    %s60 = vtos %v59
    %v61 = vstv %s60
    %vm62 = vcmp.eq.f32.partialorder %v49, %v61
    %vm63 = vmand %vm62, %vm48
    %v64 = vsel %vm63, %v46, 128
    %v65 = vsel %vm50, %v64, 2147483647
    %v66 = vand.u32 %v65, 65535
    %v67 = vshra.s32 %v65, 16
    %v68 = vcvt.s32.f32 %v66
    %v69 = vcvt.s32.f32 %v67
    %70 = vmin.xlane.f32.xlu0 %v69
    %v71 = vpop.xlane.xlu0 %70
    %vm72 = vcmp.eq.f32.partialorder %v69, %v71
    %v73 = vsel %vm72, %v68, inf
    %74 = vmin.xlane.f32.xlu0 %v73
    %v75 = vpop.xlane.xlu0 %74
    %v76 = vcvt.f32.s32 %v75
    %v77 = vcvt.f32.s32 %v71
    %v78 = vshll.u32 %v77, 16
    %v79 = vadd.s32 %v78, %v76
    %v80 = vrot.slane %v79, 4
    %vm81 = vcmp.lt.s32.totalorder %v79, %v80
    %v82 = vsel %vm81, %v79, %v80
    %v83 = vrot.slane %v82, 2
    %vm84 = vcmp.lt.s32.totalorder %v82, %v83
    %v85 = vsel %vm84, %v82, %v83
    %v86 = vrot.slane %v85, 1
    %vm87 = vcmp.lt.s32.totalorder %v85, %v86
    %v88 = vsel %vm87, %v85, %v86
    %s89 = vtos %v88
    %p90 = scmp.lt.s32.totalorder %s89, 7
    %s91 = scalar_select %p90, %s89, 7
    %vm92 = vcmp.eq.s32.totalorder %v46, 0
    %v93 = vsel %vm92, %v61, 0.0
    %vm94 = vcmp.eq.s32.totalorder %v44, 0
    %v95 = vstv %s91
    %vm96 = vcmp.eq.s32.totalorder %v46, %v95
    %vm97 = vmand %vm94, %vm96
    %v98 = vsel %vm97, 1.0, 0.0
    %v99 = vsel %vm48, %v47, inf
    %v100 = vsel %vm50, %v99, inf
    %101 = vmin.xlane.f32.xlu0 %v100
    %v102 = vpop.xlane.xlu0 %101
    %v103 = vrot.slane %v102, 4
    %v104 = vmin.f32 %v102, %v103
    %v105 = vrot.slane %v104, 2
    %v106 = vmin.f32 %v104, %v105
    %v107 = vrot.slane %v106, 1
    %v108 = vmin.f32 %v106, %v107
    %s109 = vtos %v108
    %v110 = vstv %s109
    %vm111 = vcmp.eq.f32.partialorder %v99, %v110
    %vm112 = vmand %vm111, %vm48
    %v113 = vsel %vm112, %v46, 128
    %v114 = vsel %vm50, %v113, 2147483647
    %v115 = vand.u32 %v114, 65535
    %v116 = vshra.s32 %v114, 16
    %v117 = vcvt.s32.f32 %v115
    %v118 = vcvt.s32.f32 %v116
    %119 = vmin.xlane.f32.xlu0 %v118
    %v120 = vpop.xlane.xlu0 %119
    %vm121 = vcmp.eq.f32.partialorder %v118, %v120
    %v122 = vsel %vm121, %v117, inf
    %123 = vmin.xlane.f32.xlu0 %v122
    %v124 = vpop.xlane.xlu0 %123
    %v125 = vcvt.f32.s32 %v124
    %v126 = vcvt.f32.s32 %v120
    %v127 = vshll.u32 %v126, 16
    %v128 = vadd.s32 %v127, %v125
    %v129 = vrot.slane %v128, 4
    %vm130 = vcmp.lt.s32.totalorder %v128, %v129
    %v131 = vsel %vm130, %v128, %v129
    %v132 = vrot.slane %v131, 2
    %vm133 = vcmp.lt.s32.totalorder %v131, %v132
    %v134 = vsel %vm133, %v131, %v132
    %v135 = vrot.slane %v134, 1
    %vm136 = vcmp.lt.s32.totalorder %v134, %v135
    %v137 = vsel %vm136, %v134, %v135
    %s138 = vtos %v137
    %p139 = scmp.lt.s32.totalorder %s138, 7
    %s140 = scalar_select %p139, %s138, 7
    %vm141 = vcmp.eq.s32.totalorder %v46, 1
    %v142 = vsel %vm141, %v110, %v93
    %vm143 = vcmp.eq.s32.totalorder %v44, 1
    %v144 = vstv %s140
    %vm145 = vcmp.eq.s32.totalorder %v46, %v144
    %vm146 = vmand %vm143, %vm145
    %v147 = vsel %vm146, 1.0, %v98
    %148 = vst [vmem:[#allocation7] sm:$0x1] %v142
    %v149 = vld [vmem:[#allocation5] sm:$0xff]
    %vm150 = vcmask 64512
    %v152 = vsel %vm150, %v147, 0
    %154 = vmatpush.msra.mxu0 0.0
    %155 = vmatpush.msra.mxu0 0.0
    %156 = vmatpush.msra.mxu0 0.0
    %157 = vmatpush.msra.mxu0 0.0
    %158 = vmatpush.msra.mxu0 0.0
    %159 = vmatpush.msra.mxu0 0.0
    %160 = vmatpush.msra.mxu0 0.0
    %161 = vmatpush.msra.mxu0 0.0
    %162 = vmatpush.msra.mxu0 0.0
    %163 = vmatpush.msra.mxu0 0.0
    %164 = vmatpush.msra.mxu0 0.0
    %165 = vmatpush.msra.mxu0 0.0
    %166 = vmatpush.msra.mxu0 0.0
    %167 = vmatpush.msra.mxu0 0.0
    %168 = vmatpush.msra.mxu0 0.0
    %169 = vmatpush.msra.mxu0 %v149
    %170 = vmatmul.f32.gmra.mxu0 %v152
    %v171 = vpop.f32.mrf.mxu0
    %v172 = vadd.f32 0.0, %v171
    %173 = vdwg.mxu0
    %vm174 = vcmask 254976
    %175 = vst.msk [vmem:[#allocation8] sm:$0x3] %vm174, %v172
    // Predicated region
    $region18: #{tpu_custom_call.1} parent=1 // pred_check
      _
    $region19: #{tpu_custom_call.1} parent=1 // pred_check_branch
      %177 = sbr.rel (0) target = $region21
    $region20: #{tpu_custom_call.1} parent=1 // pred_region
      %179 = vsyncadd [#allocation4], 0
      %s181 = sshll.u32 [#allocation7], 4
      %s182 = int_to_ptr.vmem [resolvable:$true] %s181
      %s183 = sshll.u32 %s2, 4
      %s184 = int_to_ptr.hbm [resolvable:$true] %s183
      %186 = dma.vmem_to_hbm [thread:$0]  %s182, 16, %s184, [#allocation4]
    $region21: #{tpu_custom_call.1} parent=1 // pred_fallthru
      _
    // Predicated region
    $region22: #{tpu_custom_call.1} parent=1 // pred_check
      _
    $region23: #{tpu_custom_call.1} parent=1 // pred_check_branch
      %188 = sbr.rel (0) target = $region25
    $region24: #{tpu_custom_call.1} parent=1 // pred_region
      %190 = vsyncadd [#allocation9], 0
      %s192 = sshll.u32 [#allocation8], 4
      %s193 = int_to_ptr.vmem [resolvable:$true] %s192
      %s194 = sshll.u32 %s3, 4
      %s195 = int_to_ptr.hbm [resolvable:$true] %s194
      %197 = dma.vmem_to_hbm [thread:$0]  %s193, 32, %s195, [#allocation9]
    $region25: #{tpu_custom_call.1} parent=1 // pred_fallthru
      _
    // Predicated region
    $region26: #{tpu_custom_call.1} parent=1 // pred_check
      _
    $region27: #{tpu_custom_call.1} parent=1 // pred_check_branch
      %199 = sbr.rel (0) target = $region29
    $region28: #{tpu_custom_call.1} parent=1 // pred_region
      %201 = dma.done [#allocation4], 16
    $region29: #{tpu_custom_call.1} parent=1 // pred_fallthru
      _
    // Predicated region
    $region30: #{tpu_custom_call.1} parent=1 // pred_check
      _
    $region31: #{tpu_custom_call.1} parent=1 // pred_check_branch
      %203 = sbr.rel (0) target = $region33
    $region32: #{tpu_custom_call.1} parent=1 // pred_region
      %205 = dma.done [#allocation9], 32
    $region33: #{tpu_custom_call.1} parent=1 // pred_fallthru
      _
    %206 = vsyncpa [#allocation3], 1
    %207 = vsyncpa [#allocation6], 1
    %208 = vsyncpa [#allocation4], 1
    %209 = vsyncpa [#allocation9], 1

</llo_original>
